<compile_context>
chip_gen: v6e
topology: v6e:2x2x1
jax: 0.10.0
libtpu: 0.0.40
codegen_flags: <defaults>
</compile_context>

<pallas_src>
import jax
import jax.numpy as jnp
from jax.experimental import pallas as pl
from jax.experimental.pallas import tpu as pltpu

STATE_SIZE = 16
ACTION_SIZE = 4
HIDDEN = 64
OUT_PAD = 128            # lane-dense padded width of w2 for the MXU only
MAX_BLOCK_ROWS = 2048    # batch tile (multiple of 8)
PALLAS_MIN_BATCH = 512   # below this, plain jnp is faster than kernel dispatch
PRECISION = jax.lax.Precision.HIGHEST


def _round_up(x, m):
    return ((x + m - 1) // m) * m


def ann_kernel(x_ref, w1_ref, b1_ref, w2_ref, b2_ref, o_ref):
    # fc1: (TM, 16) @ (16, 64) -> f32
    x = x_ref[...].astype(jnp.float32)
    h = jnp.dot(x, w1_ref[...],
                preferred_element_type=jnp.float32, precision=PRECISION)
    # bias + ReLU in f32 (VPU; also the right choice on v5e which has no bf16 VPU)
    h = jnp.maximum(h + b1_ref[...], 0.0)
    # fc2: (TM, 64) @ (64, 128 padded) -> f32; lane-slice to the 4 real columns
    y = jnp.dot(h, w2_ref[...],
                preferred_element_type=jnp.float32, precision=PRECISION)
    o_ref[...] = (y[:, :ACTION_SIZE] + b2_ref[...]).astype(o_ref.dtype)


def prepare_params(w1, b1, w2, b2):
    """One-time packing: f32 params, w2 zero-padded to 128 output lanes."""
    w1f = w1.astype(jnp.float32)
    b1f = b1.astype(jnp.float32).reshape(1, HIDDEN)
    w2p = jnp.zeros((HIDDEN, OUT_PAD), jnp.float32).at[:, :ACTION_SIZE].set(
        w2.astype(jnp.float32))
    b2f = b2.astype(jnp.float32).reshape(1, ACTION_SIZE)
    return w1f, b1f, w2p, b2f


def ann_forward(state, params, *, force_pallas=False):
    """state: (B, 16); params from prepare_params; returns (B, 4) f32."""
    w1, b1, w2p, b2 = params
    B = state.shape[0]

    # Tiny batches: kernel dispatch overhead dominates -> plain jnp path.
    if not force_pallas and B < PALLAS_MIN_BATCH:
        x = state.astype(jnp.float32)
        h = jnp.maximum(jnp.dot(x, w1, precision=PRECISION) + b1, 0.0)
        return jnp.dot(h, w2p[:, :ACTION_SIZE], precision=PRECISION) + b2

    # Batch tile: largest multiple of 8 up to MAX_BLOCK_ROWS; ragged last tile
    # is handled by Pallas (padded read, masked writeback), no explicit jnp.pad.
    TM = min(MAX_BLOCK_ROWS, _round_up(B, 8))
    grid = (pl.cdiv(B, TM),)

    out = pl.pallas_call(
        ann_kernel,
        out_shape=jax.ShapeDtypeStruct((B, ACTION_SIZE), jnp.float32),
        grid_spec=pltpu.PrefetchScalarGridSpec(
            num_scalar_prefetch=0,
            grid=grid,
            in_specs=[
                pl.BlockSpec((TM, STATE_SIZE), lambda i: (i, 0)),       # x: streamed
                pl.BlockSpec((STATE_SIZE, HIDDEN), lambda i: (0, 0)),   # w1: resident
                pl.BlockSpec((1, HIDDEN), lambda i: (0, 0)),            # b1: resident
                pl.BlockSpec((HIDDEN, OUT_PAD), lambda i: (0, 0)),      # w2: resident
                pl.BlockSpec((1, ACTION_SIZE), lambda i: (0, 0)),       # b2: resident
            ],
            out_specs=pl.BlockSpec((TM, ACTION_SIZE), lambda i: (i, 0)),
        ),
        compiler_params=pltpu.CompilerParams(
            dimension_semantics=("parallel",),
        ),
    )(state, w1, b1, w2p, b2)

    return out


def init_params(key):
    # PyTorch nn.Linear default init: U(-1/sqrt(fan_in), 1/sqrt(fan_in)),
    # weights stored as (in_features, out_features) so y = x @ W + b.
    k1, k2, k3, k4 = jax.random.split(key, 4)
    bound1 = 1.0 / jnp.sqrt(jnp.float32(STATE_SIZE))
    bound2 = 1.0 / jnp.sqrt(jnp.float32(HIDDEN))
    w1 = jax.random.uniform(k1, (STATE_SIZE, HIDDEN), jnp.float32, -bound1, bound1)
    b1 = jax.random.uniform(k2, (1, HIDDEN), jnp.float32, -bound1, bound1)
    w2 = jax.random.uniform(k3, (HIDDEN, ACTION_SIZE), jnp.float32, -bound2, bound2)
    b2 = jax.random.uniform(k4, (1, ACTION_SIZE), jnp.float32, -bound2, bound2)
    return w1, b1, w2, b2


def _reference(state, w1, b1, w2, b2):
    # Pure f32 reference with the same matmul precision as the kernel.
    x = state.astype(jnp.float32)
    h = jnp.maximum(jnp.dot(x, w1, precision=PRECISION) + b1.reshape(1, HIDDEN), 0.0)
    return jnp.dot(h, w2, precision=PRECISION) + b2.reshape(1, ACTION_SIZE)


if __name__ == "__main__":
    key = jax.random.PRNGKey(0)
    kp, kx1, kx2 = jax.random.split(key, 3)
    w1, b1, w2, b2 = init_params(kp)
    params = prepare_params(w1, b1, w2, b2)

    # Small, module-consistent batch — force the Pallas path so the kernel runs.
    B_small = 2
    state_small = jax.random.normal(kx1, (B_small, STATE_SIZE), jnp.float32)
    out_small = jax.block_until_ready(
        ann_forward(state_small, params, force_pallas=True))
    ref_small = _reference(state_small, w1, b1, w2, b2)
    assert out_small.shape == (B_small, ACTION_SIZE)
    assert jnp.allclose(out_small, ref_small, atol=1e-3, rtol=1e-3)

    # Small batch through the gated (plain jnp) path as well.
    out_small_jnp = jax.block_until_ready(ann_forward(state_small, params))
    assert jnp.allclose(out_small_jnp, ref_small, atol=1e-3, rtol=1e-3)

    # Large batch: multi-tile pipelined path with a ragged last tile.
    B_big = 5000
    state_big = jax.random.normal(kx2, (B_big, STATE_SIZE), jnp.float32)
    out_big = jax.block_until_ready(ann_forward(state_big, params))
    ref_big = _reference(state_big, w1, b1, w2, b2)
    assert out_big.shape == (B_big, ACTION_SIZE)
    assert jnp.allclose(out_big, ref_big, atol=1e-3, rtol=1e-3)

    print("KERNEL_OK")
</pallas_src>

<mosaic_0001>
module attributes {stable_mosaic.version = 11 : i64} {
  func.func @ann_kernel(%arg0: i32, %arg1: memref<8x16xf32, #tpu.memory_space<vmem>>, %arg2: memref<16x64xf32, #tpu.memory_space<vmem>>, %arg3: memref<1x64xf32, #tpu.memory_space<vmem>>, %arg4: memref<64x128xf32, #tpu.memory_space<vmem>>, %arg5: memref<1x4xf32, #tpu.memory_space<vmem>>, %arg6: memref<8x4xf32, #tpu.memory_space<vmem>>) attributes {dimension_semantics = [#tpu.dimension_semantics<parallel>], iteration_bounds = array<i64: 1>, scalar_prefetch = 0 : i64, scratch_operands = 0 : i64, tpu.core_type = #tpu.core_type<tc>, window_params = [{transform_indices = @transform_0, window_bounds = array<i64: 8, 16>}, {pipeline_mode = #tpu.pipeline_mode<synchronous>, transform_indices = @transform_1, window_bounds = array<i64: 16, 64>}, {pipeline_mode = #tpu.pipeline_mode<synchronous>, transform_indices = @transform_2, window_bounds = array<i64: 1, 64>}, {pipeline_mode = #tpu.pipeline_mode<synchronous>, transform_indices = @transform_3, window_bounds = array<i64: 64, 128>}, {pipeline_mode = #tpu.pipeline_mode<synchronous>, transform_indices = @transform_4, window_bounds = array<i64: 1, 4>}, {transform_indices = @transform_5, window_bounds = array<i64: 8, 4>}]} {
    %c0 = arith.constant 0 : index
    %c0_0 = arith.constant 0 : index
    %0 = vector.load %arg1[%c0, %c0_0] : memref<8x16xf32, #tpu.memory_space<vmem>>, vector<8x16xf32>
    %c0_1 = arith.constant 0 : index
    %c0_2 = arith.constant 0 : index
    %1 = vector.load %arg2[%c0_1, %c0_2] : memref<16x64xf32, #tpu.memory_space<vmem>>, vector<16x64xf32>
    %cst = arith.constant dense<0.000000e+00> : vector<8x64xf32>
    %2 = tpu.matmul %0, %1, %cst {dimension_numbers = #tpu.dot_dimension_numbers<[1], [0], [0], [1], [0, 0, 1, 1], [], []>, precision = #tpu.contract_precision<fp32>} : vector<8x16xf32>, vector<16x64xf32>, vector<8x64xf32> -> vector<8x64xf32>
    %c0_3 = arith.constant 0 : index
    %c0_4 = arith.constant 0 : index
    %3 = vector.load %arg3[%c0_3, %c0_4] : memref<1x64xf32, #tpu.memory_space<vmem>>, vector<1x64xf32>
    %4 = vector.broadcast %3 : vector<1x64xf32> to vector<8x64xf32>
    %5 = arith.addf %2, %4 : vector<8x64xf32>
    %cst_5 = arith.constant 0.000000e+00 : f32
    %6 = vector.broadcast %cst_5 : f32 to vector<8x64xf32>
    %7 = arith.maximumf %5, %6 : vector<8x64xf32>
    %c0_6 = arith.constant 0 : index
    %c0_7 = arith.constant 0 : index
    %8 = vector.load %arg4[%c0_6, %c0_7] : memref<64x128xf32, #tpu.memory_space<vmem>>, vector<64x128xf32>
    %cst_8 = arith.constant dense<0.000000e+00> : vector<8x128xf32>
    %9 = tpu.matmul %7, %8, %cst_8 {dimension_numbers = #tpu.dot_dimension_numbers<[1], [0], [0], [1], [0, 0, 1, 1], [], []>, precision = #tpu.contract_precision<fp32>} : vector<8x64xf32>, vector<64x128xf32>, vector<8x128xf32> -> vector<8x128xf32>
    %10 = vector.extract_strided_slice %9 {offsets = [0, 0], sizes = [8, 4], strides = [1, 1]} : vector<8x128xf32> to vector<8x4xf32>
    %c0_9 = arith.constant 0 : index
    %c0_10 = arith.constant 0 : index
    %11 = vector.load %arg5[%c0_9, %c0_10] : memref<1x4xf32, #tpu.memory_space<vmem>>, vector<1x4xf32>
    %12 = vector.broadcast %11 : vector<1x4xf32> to vector<8x4xf32>
    %13 = arith.addf %10, %12 : vector<8x4xf32>
    %c0_11 = arith.constant 0 : index
    %c0_12 = arith.constant 0 : index
    %14 = vector.load %arg6[%c0_11, %c0_12] : memref<8x4xf32, #tpu.memory_space<vmem>>, vector<8x4xf32>
    tpu.vector_store %arg6[%c0_11, %c0_12], %13 {strides = array<i32>} : memref<8x4xf32, #tpu.memory_space<vmem>>, vector<8x4xf32>,
    return
  }
  func.func @transform_0(%arg0: i32) -> (i32, i32) {
    %c0_i32 = arith.constant 0 : i32
    %c0_i32_0 = arith.constant 0 : i32
    return %arg0, %c0_i32 : i32, i32
  }
  func.func @transform_1(%arg0: i32) -> (i32, i32) {
    %c0_i32 = arith.constant 0 : i32
    %c0_i32_0 = arith.constant 0 : i32
    %c0_i32_1 = arith.constant 0 : i32
    return %c0_i32, %c0_i32_0 : i32, i32
  }
  func.func @transform_2(%arg0: i32) -> (i32, i32) {
    %c0_i32 = arith.constant 0 : i32
    %c0_i32_0 = arith.constant 0 : i32
    %c0_i32_1 = arith.constant 0 : i32
    return %c0_i32, %c0_i32_0 : i32, i32
  }
  func.func @transform_3(%arg0: i32) -> (i32, i32) {
    %c0_i32 = arith.constant 0 : i32
    %c0_i32_0 = arith.constant 0 : i32
    %c0_i32_1 = arith.constant 0 : i32
    return %c0_i32, %c0_i32_0 : i32, i32
  }
  func.func @transform_4(%arg0: i32) -> (i32, i32) {
    %c0_i32 = arith.constant 0 : i32
    %c0_i32_0 = arith.constant 0 : i32
    %c0_i32_1 = arith.constant 0 : i32
    return %c0_i32, %c0_i32_0 : i32, i32
  }
  func.func @transform_5(%arg0: i32) -> (i32, i32) {
    %c0_i32 = arith.constant 0 : i32
    %c0_i32_0 = arith.constant 0 : i32
    return %arg0, %c0_i32 : i32, i32
  }
}

</mosaic_0001>

<llo_original>
// kernel: tpu_custom_call.1
$region0: #{tpu_custom_call.1}
  #allocation0 [shape = 'u32[]', space=smem, size = 0x4, offset = 0x4, fixed_abs, tag = 'smem constant byte address 0x4 - core index']
  #allocation1 [shape = 'u32[144,128]{1,0:T(1,128)}', space=vmem, size = 0x12000, scoped, tag = 'internal scratch']
  %s0 = inlined_call_operand.hbm [shape: f32[2,16], index: 0, kind: input, shape index: {}]
  %s1 = inlined_call_operand.hbm [shape: f32[16,64], index: 1, kind: input, shape index: {}]
  %s2 = inlined_call_operand.vmem [shape: f32[1,64], index: 2, kind: input, shape index: {}]
  %s3 = inlined_call_operand.hbm [shape: f32[64,128], index: 3, kind: input, shape index: {}]
  %s4 = inlined_call_operand.vmem [shape: f32[1,4], index: 4, kind: input, shape index: {}]
  %s5 = inlined_call_operand.hbm [shape: f32[2,4], index: 5, kind: output, shape index: {}]
  %s6 = sld [smem:[#allocation0]]
  $region42: #{tpu_custom_call.1} parent=0
    _
  %s8 = ssub.s32 1, %s6
  %s9 = scalar_select 0, %s8, %s6
  $region1: #{tpu_custom_call.1} parent=0
    #allocation2 [shape = 'u8[4096]{0}', space=vmem, size = 0x1000, scoped, tag = 'input window, operand 0, single buffered']
    #allocation3 [shape = 's32[1]{0}', space=sflag, size = 0x4, scoped, tag = 'scoped memory for tpu_custom_call.1']
    #allocation4 [shape = 's32[1]{0}', space=sflag, size = 0x4, scoped, tag = 'scoped memory for tpu_custom_call.1']
    #allocation5 [shape = 'u8[8192]{0}', space=vmem, size = 0x2000, scoped, tag = 'input window, operand 1, single buffered']
    #allocation6 [shape = 's32[1]{0}', space=sflag, size = 0x4, scoped, tag = 'scoped memory for tpu_custom_call.1']
    #allocation7 [shape = 'u8[32768]{0}', space=vmem, size = 0x8000, scoped, tag = 'input window, operand 3, single buffered']
    #allocation8 [shape = 'u8[4096]{0}', space=vmem, size = 0x1000, scoped, tag = 'output window, operand 0, single buffered']
    %10 = vsyncpa [#allocation3], 0
    %11 = vsyncpa [#allocation6], 0
    %12 = vsyncpa [#allocation4], 0
    // Predicated region
    $region2: #{tpu_custom_call.1} parent=1 // pred_check
      _
    $region3: #{tpu_custom_call.1} parent=1 // pred_check_branch
      %14 = sbr.rel (0) target = $region5
    $region4: #{tpu_custom_call.1} parent=1 // pred_region
      %s16 = ssub.s32 128, 32
      %17 = vsyncadd [#allocation3], %s16
      %s18 = sshll.u32 [#allocation2], 4
      %s19 = int_to_ptr.vmem [resolvable:$true] %s18
      %24 = dma.hbm_to_vmem [thread:$0]  %s0, 32, %s19, [#allocation3], 32, 32, 2
    $region5: #{tpu_custom_call.1} parent=1 // pred_fallthru
      _
    // Predicated region
    $region6: #{tpu_custom_call.1} parent=1 // pred_check
      _
    $region7: #{tpu_custom_call.1} parent=1 // pred_check_branch
      %26 = sbr.rel (0) target = $region9
    $region8: #{tpu_custom_call.1} parent=1 // pred_region
      %s28 = ssub.s32 256, 256
      %29 = vsyncadd [#allocation6], %s28
      %s30 = sshll.u32 [#allocation5], 4
      %s31 = int_to_ptr.vmem [resolvable:$true] %s30
      %36 = dma.hbm_to_vmem [thread:$0]  %s1, 256, %s31, [#allocation6], 128, 128, 8
    $region9: #{tpu_custom_call.1} parent=1 // pred_fallthru
      _
    // Predicated region
    $region10: #{tpu_custom_call.1} parent=1 // pred_check
      _
    $region11: #{tpu_custom_call.1} parent=1 // pred_check_branch
      %38 = sbr.rel (0) target = $region13
    $region12: #{tpu_custom_call.1} parent=1 // pred_region
      _
    $region13: #{tpu_custom_call.1} parent=1 // pred_fallthru
      _
    // Predicated region
    $region14: #{tpu_custom_call.1} parent=1 // pred_check
      _
    $region15: #{tpu_custom_call.1} parent=1 // pred_check_branch
      %40 = sbr.rel (0) target = $region17
    $region16: #{tpu_custom_call.1} parent=1 // pred_region
      %s42 = ssub.s32 1024, 1024
      %43 = vsyncadd [#allocation6], %s42
      %s44 = sshll.u32 [#allocation7], 4
      %s45 = int_to_ptr.vmem [resolvable:$true] %s44
      %50 = dma.hbm_to_vmem [thread:$0]  %s3, 1024, %s45, [#allocation6], 128, 128, 8
    $region17: #{tpu_custom_call.1} parent=1 // pred_fallthru
      _
    // Predicated region
    $region18: #{tpu_custom_call.1} parent=1 // pred_check
      _
    $region19: #{tpu_custom_call.1} parent=1 // pred_check_branch
      %52 = sbr.rel (0) target = $region21
    $region20: #{tpu_custom_call.1} parent=1 // pred_region
      _
    $region21: #{tpu_custom_call.1} parent=1 // pred_fallthru
      _
    // Predicated region
    $region22: #{tpu_custom_call.1} parent=1 // pred_check
      _
    $region23: #{tpu_custom_call.1} parent=1 // pred_check_branch
      %54 = sbr.rel (0) target = $region25
    $region24: #{tpu_custom_call.1} parent=1 // pred_region
      %55 = dma.done [#allocation3], 128
    $region25: #{tpu_custom_call.1} parent=1 // pred_fallthru
      _
    // Predicated region
    $region26: #{tpu_custom_call.1} parent=1 // pred_check
      _
    $region27: #{tpu_custom_call.1} parent=1 // pred_check_branch
      %57 = sbr.rel (0) target = $region29
    $region28: #{tpu_custom_call.1} parent=1 // pred_region
      %58 = dma.done [#allocation6], 256
    $region29: #{tpu_custom_call.1} parent=1 // pred_fallthru
      _
    // Predicated region
    $region30: #{tpu_custom_call.1} parent=1 // pred_check
      _
    $region31: #{tpu_custom_call.1} parent=1 // pred_check_branch
      %60 = sbr.rel (0) target = $region33
    $region32: #{tpu_custom_call.1} parent=1 // pred_region
      %61 = dma.done [#allocation6], 1024
    $region33: #{tpu_custom_call.1} parent=1 // pred_fallthru
      _
    %v62 = vld [vmem:[#allocation2] sm:$0xff]
    %v63 = vld [vmem:[#allocation5] sm:$0xff]
    %v64 = vld [vmem:[#allocation5 + $0x8] sm:$0xff]
    %v65 = vld [vmem:[%s2] sm:$0x1]
    %v67 = vlaneseq
    %v68 = vshrl.u32 %v67, 7
    %v69 = vsub.s32 0, %v68
    %v70 = vrot.slane %v65, %v69
    %vm72 = vcmask 130048
    %v74 = vsel %vm72, %v62, 0
    %76 = vmatprep.subr.mxu0 0.0
    %77 = vmatpush1.msra.mxu0 0.0
    %78 = vmatprep.subr.mxu0 0.0
    %79 = vmatpush1.msra.mxu0 0.0
    %80 = vmatprep.subr.mxu0 0.0
    %81 = vmatpush1.msra.mxu0 0.0
    %82 = vmatprep.subr.mxu0 0.0
    %83 = vmatpush1.msra.mxu0 0.0
    %84 = vmatprep.subr.mxu0 0.0
    %85 = vmatpush1.msra.mxu0 0.0
    %86 = vmatprep.subr.mxu0 0.0
    %87 = vmatpush1.msra.mxu0 0.0
    %88 = vmatprep.subr.mxu0 0.0
    %89 = vmatpush1.msra.mxu0 0.0
    %90 = vmatprep.subr.mxu0 0.0
    %91 = vmatpush1.msra.mxu0 0.0
    %92 = vmatprep.subr.mxu0 0.0
    %93 = vmatpush1.msra.mxu0 0.0
    %94 = vmatprep.subr.mxu0 0.0
    %95 = vmatpush1.msra.mxu0 0.0
    %96 = vmatprep.subr.mxu0 0.0
    %97 = vmatpush1.msra.mxu0 0.0
    %98 = vmatprep.subr.mxu0 0.0
    %99 = vmatpush1.msra.mxu0 0.0
    %100 = vmatprep.subr.mxu0 0.0
    %101 = vmatpush1.msra.mxu0 0.0
    %102 = vmatprep.subr.mxu0 0.0
    %103 = vmatpush1.msra.mxu0 0.0
    %104 = vmatprep.subr.mxu0 0.0
    %v105 = vand.u32 %v64, 4294901760
    %106 = vmatpush1.msra.mxu0 %v105
    %107 = vmatprep.subr.mxu0 0.0
    %v108 = vand.u32 %v63, 4294901760
    %109 = vmatpush1.msra.mxu0 %v108
    %110 = vmatprep.subr.mxu0 0.0
    %111 = vmatpush2.msra.mxu0 0.0
    %112 = vmatprep.subr.mxu0 0.0
    %113 = vmatpush2.msra.mxu0 0.0
    %114 = vmatprep.subr.mxu0 0.0
    %115 = vmatpush2.msra.mxu0 0.0
    %116 = vmatprep.subr.mxu0 0.0
    %117 = vmatpush2.msra.mxu0 0.0
    %118 = vmatprep.subr.mxu0 0.0
    %119 = vmatpush2.msra.mxu0 0.0
    %120 = vmatprep.subr.mxu0 0.0
    %121 = vmatpush2.msra.mxu0 0.0
    %122 = vmatprep.subr.mxu0 0.0
    %123 = vmatpush2.msra.mxu0 0.0
    %124 = vmatprep.subr.mxu0 0.0
    %125 = vmatpush2.msra.mxu0 0.0
    %126 = vmatprep.subr.mxu0 0.0
    %127 = vmatpush2.msra.mxu0 0.0
    %128 = vmatprep.subr.mxu0 0.0
    %129 = vmatpush2.msra.mxu0 0.0
    %130 = vmatprep.subr.mxu0 0.0
    %131 = vmatpush2.msra.mxu0 0.0
    %132 = vmatprep.subr.mxu0 0.0
    %133 = vmatpush2.msra.mxu0 0.0
    %134 = vmatprep.subr.mxu0 0.0
    %135 = vmatpush2.msra.mxu0 0.0
    %136 = vmatprep.subr.mxu0 0.0
    %137 = vmatpush2.msra.mxu0 0.0
    %138 = vmatprep.subr.mxu0 0.0
    %139 = vmatpush2.msra.mxu0 0.0
    %140 = vmatprep.subr.mxu0 0.0
    %141 = vmatpush2.msra.mxu0 0.0
    %142 = vmatprep.mubr.f32.mxu0 0.0
    %v143 = vand.u32 %v74, 4294901760
    %v144 = vsub.f32 %v74, %v143
    %v145 = vand.u32 %v144, 4294901760
    %v146 = vsub.f32 %v144, %v145
    %v147 = vand.u32 %v146, 4294901760
    %148 = vmatmul.mubr.f32.gmra.mxu0 %v147
    %v149 = vpop.f32.mrf.mxu0
    %v150 = vadd.f32 %v70, %v149
    %v151 = vpop.f32.mrf.mxu0
    %152 = vdwg.mxu0
    %153 = vmatprep.subr.mxu0 0.0
    %154 = vmatpush1.msra.mxu0 0.0
    %155 = vmatprep.subr.mxu0 0.0
    %156 = vmatpush1.msra.mxu0 0.0
    %157 = vmatprep.subr.mxu0 0.0
    %158 = vmatpush1.msra.mxu0 0.0
    %159 = vmatprep.subr.mxu0 0.0
    %160 = vmatpush1.msra.mxu0 0.0
    %161 = vmatprep.subr.mxu0 0.0
    %162 = vmatpush1.msra.mxu0 0.0
    %163 = vmatprep.subr.mxu0 0.0
    %164 = vmatpush1.msra.mxu0 0.0
    %165 = vmatprep.subr.mxu0 0.0
    %166 = vmatpush1.msra.mxu0 0.0
    %167 = vmatprep.subr.mxu0 0.0
    %168 = vmatpush1.msra.mxu0 0.0
    %169 = vmatprep.subr.mxu0 0.0
    %170 = vmatpush1.msra.mxu0 0.0
    %171 = vmatprep.subr.mxu0 0.0
    %172 = vmatpush1.msra.mxu0 0.0
    %173 = vmatprep.subr.mxu0 0.0
    %174 = vmatpush1.msra.mxu0 0.0
    %175 = vmatprep.subr.mxu0 0.0
    %176 = vmatpush1.msra.mxu0 0.0
    %177 = vmatprep.subr.mxu0 0.0
    %178 = vmatpush1.msra.mxu0 0.0
    %179 = vmatprep.subr.mxu0 0.0
    %180 = vmatpush1.msra.mxu0 0.0
    %181 = vmatprep.subr.mxu0 0.0
    %v182 = vand.u32 %v64, 4294901760
    %v183 = vsub.f32 %v64, %v182
    %v184 = vand.u32 %v183, 4294901760
    %v185 = vsub.f32 %v183, %v184
    %v186 = vand.u32 %v185, 4294901760
    %187 = vmatpush1.msra.mxu0 %v186
    %188 = vmatprep.subr.mxu0 0.0
    %v189 = vand.u32 %v63, 4294901760
    %v190 = vsub.f32 %v63, %v189
    %v191 = vand.u32 %v190, 4294901760
    %v192 = vsub.f32 %v190, %v191
    %v193 = vand.u32 %v192, 4294901760
    %194 = vmatpush1.msra.mxu0 %v193
    %195 = vmatprep.subr.mxu0 0.0
    %196 = vmatpush2.msra.mxu0 0.0
    %197 = vmatprep.subr.mxu0 0.0
    %198 = vmatpush2.msra.mxu0 0.0
    %199 = vmatprep.subr.mxu0 0.0
    %200 = vmatpush2.msra.mxu0 0.0
    %201 = vmatprep.subr.mxu0 0.0
    %202 = vmatpush2.msra.mxu0 0.0
    %203 = vmatprep.subr.mxu0 0.0
    %204 = vmatpush2.msra.mxu0 0.0
    %205 = vmatprep.subr.mxu0 0.0
    %206 = vmatpush2.msra.mxu0 0.0
    %207 = vmatprep.subr.mxu0 0.0
    %208 = vmatpush2.msra.mxu0 0.0
    %209 = vmatprep.subr.mxu0 0.0
    %210 = vmatpush2.msra.mxu0 0.0
    %211 = vmatprep.subr.mxu0 0.0
    %212 = vmatpush2.msra.mxu0 0.0
    %213 = vmatprep.subr.mxu0 0.0
    %214 = vmatpush2.msra.mxu0 0.0
    %215 = vmatprep.subr.mxu0 0.0
    %216 = vmatpush2.msra.mxu0 0.0
    %217 = vmatprep.subr.mxu0 0.0
    %218 = vmatpush2.msra.mxu0 0.0
    %219 = vmatprep.subr.mxu0 0.0
    %220 = vmatpush2.msra.mxu0 0.0
    %221 = vmatprep.subr.mxu0 0.0
    %222 = vmatpush2.msra.mxu0 0.0
    %223 = vmatprep.subr.mxu0 0.0
    %224 = vmatpush2.msra.mxu0 0.0
    %225 = vmatprep.subr.mxu0 0.0
    %226 = vmatpush2.msra.mxu0 0.0
    %227 = vmatprep.mubr.f32.mxu0 0.0
    %v228 = vand.u32 %v74, 4294901760
    %229 = vmatmul.mubr.f32.gmra.mxu0 %v228
    %v230 = vpop.f32.mrf.mxu0
    %v231 = vadd.f32 %v150, %v230
    %v232 = vpop.f32.mrf.mxu0
    %233 = vdwg.mxu0
    %234 = vmatprep.subr.mxu0 0.0
    %235 = vmatpush1.msra.mxu0 0.0
    %236 = vmatprep.subr.mxu0 0.0
    %237 = vmatpush1.msra.mxu0 0.0
    %238 = vmatprep.subr.mxu0 0.0
    %239 = vmatpush1.msra.mxu0 0.0
    %240 = vmatprep.subr.mxu0 0.0
    %241 = vmatpush1.msra.mxu0 0.0
    %242 = vmatprep.subr.mxu0 0.0
    %243 = vmatpush1.msra.mxu0 0.0
    %244 = vmatprep.subr.mxu0 0.0
    %245 = vmatpush1.msra.mxu0 0.0
    %246 = vmatprep.subr.mxu0 0.0
    %247 = vmatpush1.msra.mxu0 0.0
    %248 = vmatprep.subr.mxu0 0.0
    %249 = vmatpush1.msra.mxu0 0.0
    %250 = vmatprep.subr.mxu0 0.0
    %251 = vmatpush1.msra.mxu0 0.0
    %252 = vmatprep.subr.mxu0 0.0
    %253 = vmatpush1.msra.mxu0 0.0
    %254 = vmatprep.subr.mxu0 0.0
    %255 = vmatpush1.msra.mxu0 0.0
    %256 = vmatprep.subr.mxu0 0.0
    %257 = vmatpush1.msra.mxu0 0.0
    %258 = vmatprep.subr.mxu0 0.0
    %259 = vmatpush1.msra.mxu0 0.0
    %260 = vmatprep.subr.mxu0 0.0
    %261 = vmatpush1.msra.mxu0 0.0
    %262 = vmatprep.subr.mxu0 0.0
    %v263 = vand.u32 %v64, 4294901760
    %v264 = vsub.f32 %v64, %v263
    %265 = vmatpush1.msra.mxu0 %v264
    %266 = vmatprep.subr.mxu0 0.0
    %v267 = vand.u32 %v63, 4294901760
    %v268 = vsub.f32 %v63, %v267
    %269 = vmatpush1.msra.mxu0 %v268
    %270 = vmatprep.subr.mxu0 0.0
    %271 = vmatpush2.msra.mxu0 0.0
    %272 = vmatprep.subr.mxu0 0.0
    %273 = vmatpush2.msra.mxu0 0.0
    %274 = vmatprep.subr.mxu0 0.0
    %275 = vmatpush2.msra.mxu0 0.0
    %276 = vmatprep.subr.mxu0 0.0
    %277 = vmatpush2.msra.mxu0 0.0
    %278 = vmatprep.subr.mxu0 0.0
    %279 = vmatpush2.msra.mxu0 0.0
    %280 = vmatprep.subr.mxu0 0.0
    %281 = vmatpush2.msra.mxu0 0.0
    %282 = vmatprep.subr.mxu0 0.0
    %283 = vmatpush2.msra.mxu0 0.0
    %284 = vmatprep.subr.mxu0 0.0
    %285 = vmatpush2.msra.mxu0 0.0
    %286 = vmatprep.subr.mxu0 0.0
    %287 = vmatpush2.msra.mxu0 0.0
    %288 = vmatprep.subr.mxu0 0.0
    %289 = vmatpush2.msra.mxu0 0.0
    %290 = vmatprep.subr.mxu0 0.0
    %291 = vmatpush2.msra.mxu0 0.0
    %292 = vmatprep.subr.mxu0 0.0
    %293 = vmatpush2.msra.mxu0 0.0
    %294 = vmatprep.subr.mxu0 0.0
    %295 = vmatpush2.msra.mxu0 0.0
    %296 = vmatprep.subr.mxu0 0.0
    %297 = vmatpush2.msra.mxu0 0.0
    %298 = vmatprep.subr.mxu0 0.0
    %299 = vmatpush2.msra.mxu0 0.0
    %300 = vmatprep.subr.mxu0 0.0
    %301 = vmatpush2.msra.mxu0 0.0
    %302 = vmatprep.mubr.f32.mxu0 0.0
    %v303 = vand.u32 %v74, 4294901760
    %v304 = vsub.f32 %v74, %v303
    %305 = vmatmul.mubr.f32.gmra.mxu0 %v304
    %v306 = vpop.f32.mrf.mxu0
    %v307 = vadd.f32 %v231, %v306
    %v308 = vpop.f32.mrf.mxu0
    %309 = vdwg.mxu0
    %310 = vmatprep.subr.mxu0 0.0
    %311 = vmatpush1.msra.mxu0 0.0
    %312 = vmatprep.subr.mxu0 0.0
    %313 = vmatpush1.msra.mxu0 0.0
    %314 = vmatprep.subr.mxu0 0.0
    %315 = vmatpush1.msra.mxu0 0.0
    %316 = vmatprep.subr.mxu0 0.0
    %317 = vmatpush1.msra.mxu0 0.0
    %318 = vmatprep.subr.mxu0 0.0
    %319 = vmatpush1.msra.mxu0 0.0
    %320 = vmatprep.subr.mxu0 0.0
    %321 = vmatpush1.msra.mxu0 0.0
    %322 = vmatprep.subr.mxu0 0.0
    %323 = vmatpush1.msra.mxu0 0.0
    %324 = vmatprep.subr.mxu0 0.0
    %325 = vmatpush1.msra.mxu0 0.0
    %326 = vmatprep.subr.mxu0 0.0
    %327 = vmatpush1.msra.mxu0 0.0
    %328 = vmatprep.subr.mxu0 0.0
    %329 = vmatpush1.msra.mxu0 0.0
    %330 = vmatprep.subr.mxu0 0.0
    %331 = vmatpush1.msra.mxu0 0.0
    %332 = vmatprep.subr.mxu0 0.0
    %333 = vmatpush1.msra.mxu0 0.0
    %334 = vmatprep.subr.mxu0 0.0
    %335 = vmatpush1.msra.mxu0 0.0
    %336 = vmatprep.subr.mxu0 0.0
    %337 = vmatpush1.msra.mxu0 0.0
    %338 = vmatprep.subr.mxu0 0.0
    %v339 = vand.u32 %v64, 4294901760
    %340 = vmatpush1.msra.mxu0 %v339
    %341 = vmatprep.subr.mxu0 0.0
    %v342 = vand.u32 %v63, 4294901760
    %343 = vmatpush1.msra.mxu0 %v342
    %344 = vmatprep.subr.mxu0 0.0
    %345 = vmatpush2.msra.mxu0 0.0
    %346 = vmatprep.subr.mxu0 0.0
    %347 = vmatpush2.msra.mxu0 0.0
    %348 = vmatprep.subr.mxu0 0.0
    %349 = vmatpush2.msra.mxu0 0.0
    %350 = vmatprep.subr.mxu0 0.0
    %351 = vmatpush2.msra.mxu0 0.0
    %352 = vmatprep.subr.mxu0 0.0
    %353 = vmatpush2.msra.mxu0 0.0
    %354 = vmatprep.subr.mxu0 0.0
    %355 = vmatpush2.msra.mxu0 0.0
    %356 = vmatprep.subr.mxu0 0.0
    %357 = vmatpush2.msra.mxu0 0.0
    %358 = vmatprep.subr.mxu0 0.0
    %359 = vmatpush2.msra.mxu0 0.0
    %360 = vmatprep.subr.mxu0 0.0
    %361 = vmatpush2.msra.mxu0 0.0
    %362 = vmatprep.subr.mxu0 0.0
    %363 = vmatpush2.msra.mxu0 0.0
    %364 = vmatprep.subr.mxu0 0.0
    %365 = vmatpush2.msra.mxu0 0.0
    %366 = vmatprep.subr.mxu0 0.0
    %367 = vmatpush2.msra.mxu0 0.0
    %368 = vmatprep.subr.mxu0 0.0
    %369 = vmatpush2.msra.mxu0 0.0
    %370 = vmatprep.subr.mxu0 0.0
    %371 = vmatpush2.msra.mxu0 0.0
    %372 = vmatprep.subr.mxu0 0.0
    %373 = vmatpush2.msra.mxu0 0.0
    %374 = vmatprep.subr.mxu0 0.0
    %375 = vmatpush2.msra.mxu0 0.0
    %376 = vmatprep.mubr.f32.mxu0 0.0
    %v377 = vand.u32 %v74, 4294901760
    %v378 = vsub.f32 %v74, %v377
    %v379 = vand.u32 %v378, 4294901760
    %380 = vmatmul.mubr.f32.gmra.mxu0 %v379
    %v381 = vpop.f32.mrf.mxu0
    %v382 = vadd.f32 %v307, %v381
    %v383 = vpop.f32.mrf.mxu0
    %384 = vdwg.mxu0
    %385 = vmatprep.subr.mxu0 0.0
    %386 = vmatpush1.msra.mxu0 0.0
    %387 = vmatprep.subr.mxu0 0.0
    %388 = vmatpush1.msra.mxu0 0.0
    %389 = vmatprep.subr.mxu0 0.0
    %390 = vmatpush1.msra.mxu0 0.0
    %391 = vmatprep.subr.mxu0 0.0
    %392 = vmatpush1.msra.mxu0 0.0
    %393 = vmatprep.subr.mxu0 0.0
    %394 = vmatpush1.msra.mxu0 0.0
    %395 = vmatprep.subr.mxu0 0.0
    %396 = vmatpush1.msra.mxu0 0.0
    %397 = vmatprep.subr.mxu0 0.0
    %398 = vmatpush1.msra.mxu0 0.0
    %399 = vmatprep.subr.mxu0 0.0
    %400 = vmatpush1.msra.mxu0 0.0
    %401 = vmatprep.subr.mxu0 0.0
    %402 = vmatpush1.msra.mxu0 0.0
    %403 = vmatprep.subr.mxu0 0.0
    %404 = vmatpush1.msra.mxu0 0.0
    %405 = vmatprep.subr.mxu0 0.0
    %406 = vmatpush1.msra.mxu0 0.0
    %407 = vmatprep.subr.mxu0 0.0
    %408 = vmatpush1.msra.mxu0 0.0
    %409 = vmatprep.subr.mxu0 0.0
    %410 = vmatpush1.msra.mxu0 0.0
    %411 = vmatprep.subr.mxu0 0.0
    %412 = vmatpush1.msra.mxu0 0.0
    %413 = vmatprep.subr.mxu0 0.0
    %v414 = vand.u32 %v64, 4294901760
    %v415 = vsub.f32 %v64, %v414
    %v416 = vand.u32 %v415, 4294901760
    %417 = vmatpush1.msra.mxu0 %v416
    %418 = vmatprep.subr.mxu0 0.0
    %v419 = vand.u32 %v63, 4294901760
    %v420 = vsub.f32 %v63, %v419
    %v421 = vand.u32 %v420, 4294901760
    %422 = vmatpush1.msra.mxu0 %v421
    %423 = vmatprep.subr.mxu0 0.0
    %424 = vmatpush2.msra.mxu0 0.0
    %425 = vmatprep.subr.mxu0 0.0
    %426 = vmatpush2.msra.mxu0 0.0
    %427 = vmatprep.subr.mxu0 0.0
    %428 = vmatpush2.msra.mxu0 0.0
    %429 = vmatprep.subr.mxu0 0.0
    %430 = vmatpush2.msra.mxu0 0.0
    %431 = vmatprep.subr.mxu0 0.0
    %432 = vmatpush2.msra.mxu0 0.0
    %433 = vmatprep.subr.mxu0 0.0
    %434 = vmatpush2.msra.mxu0 0.0
    %435 = vmatprep.subr.mxu0 0.0
    %436 = vmatpush2.msra.mxu0 0.0
    %437 = vmatprep.subr.mxu0 0.0
    %438 = vmatpush2.msra.mxu0 0.0
    %439 = vmatprep.subr.mxu0 0.0
    %440 = vmatpush2.msra.mxu0 0.0
    %441 = vmatprep.subr.mxu0 0.0
    %442 = vmatpush2.msra.mxu0 0.0
    %443 = vmatprep.subr.mxu0 0.0
    %444 = vmatpush2.msra.mxu0 0.0
    %445 = vmatprep.subr.mxu0 0.0
    %446 = vmatpush2.msra.mxu0 0.0
    %447 = vmatprep.subr.mxu0 0.0
    %448 = vmatpush2.msra.mxu0 0.0
    %449 = vmatprep.subr.mxu0 0.0
    %450 = vmatpush2.msra.mxu0 0.0
    %451 = vmatprep.subr.mxu0 0.0
    %452 = vmatpush2.msra.mxu0 0.0
    %453 = vmatprep.subr.mxu0 0.0
    %454 = vmatpush2.msra.mxu0 0.0
    %455 = vmatprep.mubr.f32.mxu0 0.0
    %v456 = vand.u32 %v74, 4294901760
    %457 = vmatmul.mubr.f32.gmra.mxu0 %v456
    %v458 = vpop.f32.mrf.mxu0
    %v459 = vadd.f32 %v382, %v458
    %v460 = vpop.f32.mrf.mxu0
    %461 = vdwg.mxu0
    %462 = vmatprep.subr.mxu0 0.0
    %463 = vmatpush1.msra.mxu0 0.0
    %464 = vmatprep.subr.mxu0 0.0
    %465 = vmatpush1.msra.mxu0 0.0
    %466 = vmatprep.subr.mxu0 0.0
    %467 = vmatpush1.msra.mxu0 0.0
    %468 = vmatprep.subr.mxu0 0.0
    %469 = vmatpush1.msra.mxu0 0.0
    %470 = vmatprep.subr.mxu0 0.0
    %471 = vmatpush1.msra.mxu0 0.0
    %472 = vmatprep.subr.mxu0 0.0
    %473 = vmatpush1.msra.mxu0 0.0
    %474 = vmatprep.subr.mxu0 0.0
    %475 = vmatpush1.msra.mxu0 0.0
    %476 = vmatprep.subr.mxu0 0.0
    %477 = vmatpush1.msra.mxu0 0.0
    %478 = vmatprep.subr.mxu0 0.0
    %479 = vmatpush1.msra.mxu0 0.0
    %480 = vmatprep.subr.mxu0 0.0
    %481 = vmatpush1.msra.mxu0 0.0
    %482 = vmatprep.subr.mxu0 0.0
    %483 = vmatpush1.msra.mxu0 0.0
    %484 = vmatprep.subr.mxu0 0.0
    %485 = vmatpush1.msra.mxu0 0.0
    %486 = vmatprep.subr.mxu0 0.0
    %487 = vmatpush1.msra.mxu0 0.0
    %488 = vmatprep.subr.mxu0 0.0
    %489 = vmatpush1.msra.mxu0 0.0
    %490 = vmatprep.subr.mxu0 0.0
    %v491 = vand.u32 %v64, 4294901760
    %492 = vmatpush1.msra.mxu0 %v491
    %493 = vmatprep.subr.mxu0 0.0
    %v494 = vand.u32 %v63, 4294901760
    %495 = vmatpush1.msra.mxu0 %v494
    %496 = vmatprep.subr.mxu0 0.0
    %497 = vmatpush2.msra.mxu0 0.0
    %498 = vmatprep.subr.mxu0 0.0
    %499 = vmatpush2.msra.mxu0 0.0
    %500 = vmatprep.subr.mxu0 0.0
    %501 = vmatpush2.msra.mxu0 0.0
    %502 = vmatprep.subr.mxu0 0.0
    %503 = vmatpush2.msra.mxu0 0.0
    %504 = vmatprep.subr.mxu0 0.0
    %505 = vmatpush2.msra.mxu0 0.0
    %506 = vmatprep.subr.mxu0 0.0
    %507 = vmatpush2.msra.mxu0 0.0
    %508 = vmatprep.subr.mxu0 0.0
    %509 = vmatpush2.msra.mxu0 0.0
    %510 = vmatprep.subr.mxu0 0.0
    %511 = vmatpush2.msra.mxu0 0.0
    %512 = vmatprep.subr.mxu0 0.0
    %513 = vmatpush2.msra.mxu0 0.0
    %514 = vmatprep.subr.mxu0 0.0
    %515 = vmatpush2.msra.mxu0 0.0
    %516 = vmatprep.subr.mxu0 0.0
    %517 = vmatpush2.msra.mxu0 0.0
    %518 = vmatprep.subr.mxu0 0.0
    %519 = vmatpush2.msra.mxu0 0.0
    %520 = vmatprep.subr.mxu0 0.0
    %521 = vmatpush2.msra.mxu0 0.0
    %522 = vmatprep.subr.mxu0 0.0
    %523 = vmatpush2.msra.mxu0 0.0
    %524 = vmatprep.subr.mxu0 0.0
    %525 = vmatpush2.msra.mxu0 0.0
    %526 = vmatprep.subr.mxu0 0.0
    %527 = vmatpush2.msra.mxu0 0.0
    %528 = vmatprep.mubr.f32.mxu0 0.0
    %v529 = vand.u32 %v74, 4294901760
    %530 = vmatmul.mubr.f32.gmra.mxu0 %v529
    %v531 = vpop.f32.mrf.mxu0
    %v532 = vadd.f32 %v459, %v531
    %v533 = vpop.f32.mrf.mxu0
    %534 = vdwg.mxu0
    %v535 = vmax.f32 %v532, 0.0
    %v536 = vld [vmem:[#allocation7] sm:$0xff]
    %v537 = vld [vmem:[#allocation7 + $0x8] sm:$0xff]
    %v538 = vld [vmem:[#allocation7 + $0x10] sm:$0xff]
    %v539 = vld [vmem:[#allocation7 + $0x18] sm:$0xff]
    %v540 = vld [vmem:[#allocation7 + $0x20] sm:$0xff]
    %v541 = vld [vmem:[#allocation7 + $0x28] sm:$0xff]
    %v542 = vld [vmem:[#allocation7 + $0x30] sm:$0xff]
    %v543 = vld [vmem:[#allocation7 + $0x38] sm:$0xff]
    %vm544 = vcmask 523264
    %v546 = vsel %vm544, %v535, 0
    %548 = vmatprep.subr.mxu0 0.0
    %549 = vmatpush1.msra.mxu0 0.0
    %550 = vmatprep.subr.mxu0 0.0
    %551 = vmatpush1.msra.mxu0 0.0
    %552 = vmatprep.subr.mxu0 0.0
    %553 = vmatpush1.msra.mxu0 0.0
    %554 = vmatprep.subr.mxu0 0.0
    %555 = vmatpush1.msra.mxu0 0.0
    %556 = vmatprep.subr.mxu0 0.0
    %557 = vmatpush1.msra.mxu0 0.0
    %558 = vmatprep.subr.mxu0 0.0
    %559 = vmatpush1.msra.mxu0 0.0
    %560 = vmatprep.subr.mxu0 0.0
    %561 = vmatpush1.msra.mxu0 0.0
    %562 = vmatprep.subr.mxu0 0.0
    %563 = vmatpush1.msra.mxu0 0.0
    %564 = vmatprep.subr.mxu0 0.0
    %v565 = vand.u32 %v543, 4294901760
    %566 = vmatpush1.msra.mxu0 %v565
    %567 = vmatprep.subr.mxu0 0.0
    %v568 = vand.u32 %v542, 4294901760
    %569 = vmatpush1.msra.mxu0 %v568
    %570 = vmatprep.subr.mxu0 0.0
    %v571 = vand.u32 %v541, 4294901760
    %572 = vmatpush1.msra.mxu0 %v571
    %573 = vmatprep.subr.mxu0 0.0
    %v574 = vand.u32 %v540, 4294901760
    %575 = vmatpush1.msra.mxu0 %v574
    %576 = vmatprep.subr.mxu0 0.0
    %v577 = vand.u32 %v539, 4294901760
    %578 = vmatpush1.msra.mxu0 %v577
    %579 = vmatprep.subr.mxu0 0.0
    %v580 = vand.u32 %v538, 4294901760
    %581 = vmatpush1.msra.mxu0 %v580
    %582 = vmatprep.subr.mxu0 0.0
    %v583 = vand.u32 %v537, 4294901760
    %584 = vmatpush1.msra.mxu0 %v583
    %585 = vmatprep.subr.mxu0 0.0
    %v586 = vand.u32 %v536, 4294901760
    %587 = vmatpush1.msra.mxu0 %v586
    %588 = vmatprep.subr.mxu0 0.0
    %589 = vmatpush2.msra.mxu0 0.0
    %590 = vmatprep.subr.mxu0 0.0
    %591 = vmatpush2.msra.mxu0 0.0
    %592 = vmatprep.subr.mxu0 0.0
    %593 = vmatpush2.msra.mxu0 0.0
    %594 = vmatprep.subr.mxu0 0.0
    %595 = vmatpush2.msra.mxu0 0.0
    %596 = vmatprep.subr.mxu0 0.0
    %597 = vmatpush2.msra.mxu0 0.0
    %598 = vmatprep.subr.mxu0 0.0
    %599 = vmatpush2.msra.mxu0 0.0
    %600 = vmatprep.subr.mxu0 0.0
    %601 = vmatpush2.msra.mxu0 0.0
    %602 = vmatprep.subr.mxu0 0.0
    %603 = vmatpush2.msra.mxu0 0.0
    %604 = vmatprep.subr.mxu0 0.0
    %605 = vmatpush2.msra.mxu0 0.0
    %606 = vmatprep.subr.mxu0 0.0
    %607 = vmatpush2.msra.mxu0 0.0
    %608 = vmatprep.subr.mxu0 0.0
    %609 = vmatpush2.msra.mxu0 0.0
    %610 = vmatprep.subr.mxu0 0.0
    %611 = vmatpush2.msra.mxu0 0.0
    %612 = vmatprep.subr.mxu0 0.0
    %613 = vmatpush2.msra.mxu0 0.0
    %614 = vmatprep.subr.mxu0 0.0
    %615 = vmatpush2.msra.mxu0 0.0
    %616 = vmatprep.subr.mxu0 0.0
    %617 = vmatpush2.msra.mxu0 0.0
    %618 = vmatprep.subr.mxu0 0.0
    %619 = vmatpush2.msra.mxu0 0.0
    %620 = vmatprep.mubr.f32.mxu0 0.0
    %v621 = vand.u32 %v546, 4294901760
    %v622 = vsub.f32 %v546, %v621
    %v623 = vand.u32 %v622, 4294901760
    %v624 = vsub.f32 %v622, %v623
    %v625 = vand.u32 %v624, 4294901760
    %626 = vmatmul.mubr.f32.gmra.mxu0 %v625
    %v627 = vpop.f32.mrf.mxu0
    %v628 = vadd.f32 0.0, %v627
    %v629 = vpop.f32.mrf.mxu0
    %630 = vdwg.mxu0
    %631 = vmatprep.subr.mxu0 0.0
    %632 = vmatpush1.msra.mxu0 0.0
    %633 = vmatprep.subr.mxu0 0.0
    %634 = vmatpush1.msra.mxu0 0.0
    %635 = vmatprep.subr.mxu0 0.0
    %636 = vmatpush1.msra.mxu0 0.0
    %637 = vmatprep.subr.mxu0 0.0
    %638 = vmatpush1.msra.mxu0 0.0
    %639 = vmatprep.subr.mxu0 0.0
    %640 = vmatpush1.msra.mxu0 0.0
    %641 = vmatprep.subr.mxu0 0.0
    %642 = vmatpush1.msra.mxu0 0.0
    %643 = vmatprep.subr.mxu0 0.0
    %644 = vmatpush1.msra.mxu0 0.0
    %645 = vmatprep.subr.mxu0 0.0
    %646 = vmatpush1.msra.mxu0 0.0
    %647 = vmatprep.subr.mxu0 0.0
    %v648 = vand.u32 %v543, 4294901760
    %v649 = vsub.f32 %v543, %v648
    %v650 = vand.u32 %v649, 4294901760
    %v651 = vsub.f32 %v649, %v650
    %v652 = vand.u32 %v651, 4294901760
    %653 = vmatpush1.msra.mxu0 %v652
    %654 = vmatprep.subr.mxu0 0.0
    %v655 = vand.u32 %v542, 4294901760
    %v656 = vsub.f32 %v542, %v655
    %v657 = vand.u32 %v656, 4294901760
    %v658 = vsub.f32 %v656, %v657
    %v659 = vand.u32 %v658, 4294901760
    %660 = vmatpush1.msra.mxu0 %v659
    %661 = vmatprep.subr.mxu0 0.0
    %v662 = vand.u32 %v541, 4294901760
    %v663 = vsub.f32 %v541, %v662
    %v664 = vand.u32 %v663, 4294901760
    %v665 = vsub.f32 %v663, %v664
    %v666 = vand.u32 %v665, 4294901760
    %667 = vmatpush1.msra.mxu0 %v666
    %668 = vmatprep.subr.mxu0 0.0
    %v669 = vand.u32 %v540, 4294901760
    %v670 = vsub.f32 %v540, %v669
    %v671 = vand.u32 %v670, 4294901760
    %v672 = vsub.f32 %v670, %v671
    %v673 = vand.u32 %v672, 4294901760
    %674 = vmatpush1.msra.mxu0 %v673
    %675 = vmatprep.subr.mxu0 0.0
    %v676 = vand.u32 %v539, 4294901760
    %v677 = vsub.f32 %v539, %v676
    %v678 = vand.u32 %v677, 4294901760
    %v679 = vsub.f32 %v677, %v678
    %v680 = vand.u32 %v679, 4294901760
    %681 = vmatpush1.msra.mxu0 %v680
    %682 = vmatprep.subr.mxu0 0.0
    %v683 = vand.u32 %v538, 4294901760
    %v684 = vsub.f32 %v538, %v683
    %v685 = vand.u32 %v684, 4294901760
    %v686 = vsub.f32 %v684, %v685
    %v687 = vand.u32 %v686, 4294901760
    %688 = vmatpush1.msra.mxu0 %v687
    %689 = vmatprep.subr.mxu0 0.0
    %v690 = vand.u32 %v537, 4294901760
    %v691 = vsub.f32 %v537, %v690
    %v692 = vand.u32 %v691, 4294901760
    %v693 = vsub.f32 %v691, %v692
    %v694 = vand.u32 %v693, 4294901760
    %695 = vmatpush1.msra.mxu0 %v694
    %696 = vmatprep.subr.mxu0 0.0
    %v697 = vand.u32 %v536, 4294901760
    %v698 = vsub.f32 %v536, %v697
    %v699 = vand.u32 %v698, 4294901760
    %v700 = vsub.f32 %v698, %v699
    %v701 = vand.u32 %v700, 4294901760
    %702 = vmatpush1.msra.mxu0 %v701
    %703 = vmatprep.subr.mxu0 0.0
    %704 = vmatpush2.msra.mxu0 0.0
    %705 = vmatprep.subr.mxu0 0.0
    %706 = vmatpush2.msra.mxu0 0.0
    %707 = vmatprep.subr.mxu0 0.0
    %708 = vmatpush2.msra.mxu0 0.0
    %709 = vmatprep.subr.mxu0 0.0
    %710 = vmatpush2.msra.mxu0 0.0
    %711 = vmatprep.subr.mxu0 0.0
    %712 = vmatpush2.msra.mxu0 0.0
    %713 = vmatprep.subr.mxu0 0.0
    %714 = vmatpush2.msra.mxu0 0.0
    %715 = vmatprep.subr.mxu0 0.0
    %716 = vmatpush2.msra.mxu0 0.0
    %717 = vmatprep.subr.mxu0 0.0
    %718 = vmatpush2.msra.mxu0 0.0
    %719 = vmatprep.subr.mxu0 0.0
    %720 = vmatpush2.msra.mxu0 0.0
    %721 = vmatprep.subr.mxu0 0.0
    %722 = vmatpush2.msra.mxu0 0.0
    %723 = vmatprep.subr.mxu0 0.0
    %724 = vmatpush2.msra.mxu0 0.0
    %725 = vmatprep.subr.mxu0 0.0
    %726 = vmatpush2.msra.mxu0 0.0
    %727 = vmatprep.subr.mxu0 0.0
    %728 = vmatpush2.msra.mxu0 0.0
    %729 = vmatprep.subr.mxu0 0.0
    %730 = vmatpush2.msra.mxu0 0.0
    %731 = vmatprep.subr.mxu0 0.0
    %732 = vmatpush2.msra.mxu0 0.0
    %733 = vmatprep.subr.mxu0 0.0
    %734 = vmatpush2.msra.mxu0 0.0
    %735 = vmatprep.mubr.f32.mxu0 0.0
    %v736 = vand.u32 %v546, 4294901760
    %737 = vmatmul.mubr.f32.gmra.mxu0 %v736
    %v738 = vpop.f32.mrf.mxu0
    %v739 = vadd.f32 %v628, %v738
    %v740 = vpop.f32.mrf.mxu0
    %741 = vdwg.mxu0
    %742 = vmatprep.subr.mxu0 0.0
    %743 = vmatpush1.msra.mxu0 0.0
    %744 = vmatprep.subr.mxu0 0.0
    %745 = vmatpush1.msra.mxu0 0.0
    %746 = vmatprep.subr.mxu0 0.0
    %747 = vmatpush1.msra.mxu0 0.0
    %748 = vmatprep.subr.mxu0 0.0
    %749 = vmatpush1.msra.mxu0 0.0
    %750 = vmatprep.subr.mxu0 0.0
    %751 = vmatpush1.msra.mxu0 0.0
    %752 = vmatprep.subr.mxu0 0.0
    %753 = vmatpush1.msra.mxu0 0.0
    %754 = vmatprep.subr.mxu0 0.0
    %755 = vmatpush1.msra.mxu0 0.0
    %756 = vmatprep.subr.mxu0 0.0
    %757 = vmatpush1.msra.mxu0 0.0
    %758 = vmatprep.subr.mxu0 0.0
    %v759 = vand.u32 %v543, 4294901760
    %v760 = vsub.f32 %v543, %v759
    %761 = vmatpush1.msra.mxu0 %v760
    %762 = vmatprep.subr.mxu0 0.0
    %v763 = vand.u32 %v542, 4294901760
    %v764 = vsub.f32 %v542, %v763
    %765 = vmatpush1.msra.mxu0 %v764
    %766 = vmatprep.subr.mxu0 0.0
    %v767 = vand.u32 %v541, 4294901760
    %v768 = vsub.f32 %v541, %v767
    %769 = vmatpush1.msra.mxu0 %v768
    %770 = vmatprep.subr.mxu0 0.0
    %v771 = vand.u32 %v540, 4294901760
    %v772 = vsub.f32 %v540, %v771
    %773 = vmatpush1.msra.mxu0 %v772
    %774 = vmatprep.subr.mxu0 0.0
    %v775 = vand.u32 %v539, 4294901760
    %v776 = vsub.f32 %v539, %v775
    %777 = vmatpush1.msra.mxu0 %v776
    %778 = vmatprep.subr.mxu0 0.0
    %v779 = vand.u32 %v538, 4294901760
    %v780 = vsub.f32 %v538, %v779
    %781 = vmatpush1.msra.mxu0 %v780
    %782 = vmatprep.subr.mxu0 0.0
    %v783 = vand.u32 %v537, 4294901760
    %v784 = vsub.f32 %v537, %v783
    %785 = vmatpush1.msra.mxu0 %v784
    %786 = vmatprep.subr.mxu0 0.0
    %v787 = vand.u32 %v536, 4294901760
    %v788 = vsub.f32 %v536, %v787
    %789 = vmatpush1.msra.mxu0 %v788
    %790 = vmatprep.subr.mxu0 0.0
    %791 = vmatpush2.msra.mxu0 0.0
    %792 = vmatprep.subr.mxu0 0.0
    %793 = vmatpush2.msra.mxu0 0.0
    %794 = vmatprep.subr.mxu0 0.0
    %795 = vmatpush2.msra.mxu0 0.0
    %796 = vmatprep.subr.mxu0 0.0
    %797 = vmatpush2.msra.mxu0 0.0
    %798 = vmatprep.subr.mxu0 0.0
    %799 = vmatpush2.msra.mxu0 0.0
    %800 = vmatprep.subr.mxu0 0.0
    %801 = vmatpush2.msra.mxu0 0.0
    %802 = vmatprep.subr.mxu0 0.0
    %803 = vmatpush2.msra.mxu0 0.0
    %804 = vmatprep.subr.mxu0 0.0
    %805 = vmatpush2.msra.mxu0 0.0
    %806 = vmatprep.subr.mxu0 0.0
    %807 = vmatpush2.msra.mxu0 0.0
    %808 = vmatprep.subr.mxu0 0.0
    %809 = vmatpush2.msra.mxu0 0.0
    %810 = vmatprep.subr.mxu0 0.0
    %811 = vmatpush2.msra.mxu0 0.0
    %812 = vmatprep.subr.mxu0 0.0
    %813 = vmatpush2.msra.mxu0 0.0
    %814 = vmatprep.subr.mxu0 0.0
    %815 = vmatpush2.msra.mxu0 0.0
    %816 = vmatprep.subr.mxu0 0.0
    %817 = vmatpush2.msra.mxu0 0.0
    %818 = vmatprep.subr.mxu0 0.0
    %819 = vmatpush2.msra.mxu0 0.0
    %820 = vmatprep.subr.mxu0 0.0
    %821 = vmatpush2.msra.mxu0 0.0
    %822 = vmatprep.mubr.f32.mxu0 0.0
    %v823 = vand.u32 %v546, 4294901760
    %v824 = vsub.f32 %v546, %v823
    %825 = vmatmul.mubr.f32.gmra.mxu0 %v824
    %v826 = vpop.f32.mrf.mxu0
    %v827 = vadd.f32 %v739, %v826
    %v828 = vpop.f32.mrf.mxu0
    %829 = vdwg.mxu0
    %830 = vmatprep.subr.mxu0 0.0
    %831 = vmatpush1.msra.mxu0 0.0
    %832 = vmatprep.subr.mxu0 0.0
    %833 = vmatpush1.msra.mxu0 0.0
    %834 = vmatprep.subr.mxu0 0.0
    %835 = vmatpush1.msra.mxu0 0.0
    %836 = vmatprep.subr.mxu0 0.0
    %837 = vmatpush1.msra.mxu0 0.0
    %838 = vmatprep.subr.mxu0 0.0
    %839 = vmatpush1.msra.mxu0 0.0
    %840 = vmatprep.subr.mxu0 0.0
    %841 = vmatpush1.msra.mxu0 0.0
    %842 = vmatprep.subr.mxu0 0.0
    %843 = vmatpush1.msra.mxu0 0.0
    %844 = vmatprep.subr.mxu0 0.0
    %845 = vmatpush1.msra.mxu0 0.0
    %846 = vmatprep.subr.mxu0 0.0
    %v847 = vand.u32 %v543, 4294901760
    %848 = vmatpush1.msra.mxu0 %v847
    %849 = vmatprep.subr.mxu0 0.0
    %v850 = vand.u32 %v542, 4294901760
    %851 = vmatpush1.msra.mxu0 %v850
    %852 = vmatprep.subr.mxu0 0.0
    %v853 = vand.u32 %v541, 4294901760
    %854 = vmatpush1.msra.mxu0 %v853
    %855 = vmatprep.subr.mxu0 0.0
    %v856 = vand.u32 %v540, 4294901760
    %857 = vmatpush1.msra.mxu0 %v856
    %858 = vmatprep.subr.mxu0 0.0
    %v859 = vand.u32 %v539, 4294901760
    %860 = vmatpush1.msra.mxu0 %v859
    %861 = vmatprep.subr.mxu0 0.0
    %v862 = vand.u32 %v538, 4294901760
    %863 = vmatpush1.msra.mxu0 %v862
    %864 = vmatprep.subr.mxu0 0.0
    %v865 = vand.u32 %v537, 4294901760
    %866 = vmatpush1.msra.mxu0 %v865
    %867 = vmatprep.subr.mxu0 0.0
    %v868 = vand.u32 %v536, 4294901760
    %869 = vmatpush1.msra.mxu0 %v868
    %870 = vmatprep.subr.mxu0 0.0
    %871 = vmatpush2.msra.mxu0 0.0
    %872 = vmatprep.subr.mxu0 0.0
    %873 = vmatpush2.msra.mxu0 0.0
    %874 = vmatprep.subr.mxu0 0.0
    %875 = vmatpush2.msra.mxu0 0.0
    %876 = vmatprep.subr.mxu0 0.0
    %877 = vmatpush2.msra.mxu0 0.0
    %878 = vmatprep.subr.mxu0 0.0
    %879 = vmatpush2.msra.mxu0 0.0
    %880 = vmatprep.subr.mxu0 0.0
    %881 = vmatpush2.msra.mxu0 0.0
    %882 = vmatprep.subr.mxu0 0.0
    %883 = vmatpush2.msra.mxu0 0.0
    %884 = vmatprep.subr.mxu0 0.0
    %885 = vmatpush2.msra.mxu0 0.0
    %886 = vmatprep.subr.mxu0 0.0
    %887 = vmatpush2.msra.mxu0 0.0
    %888 = vmatprep.subr.mxu0 0.0
    %889 = vmatpush2.msra.mxu0 0.0
    %890 = vmatprep.subr.mxu0 0.0
    %891 = vmatpush2.msra.mxu0 0.0
    %892 = vmatprep.subr.mxu0 0.0
    %893 = vmatpush2.msra.mxu0 0.0
    %894 = vmatprep.subr.mxu0 0.0
    %895 = vmatpush2.msra.mxu0 0.0
    %896 = vmatprep.subr.mxu0 0.0
    %897 = vmatpush2.msra.mxu0 0.0
    %898 = vmatprep.subr.mxu0 0.0
    %899 = vmatpush2.msra.mxu0 0.0
    %900 = vmatprep.subr.mxu0 0.0
    %901 = vmatpush2.msra.mxu0 0.0
    %902 = vmatprep.mubr.f32.mxu0 0.0
    %v903 = vand.u32 %v546, 4294901760
    %v904 = vsub.f32 %v546, %v903
    %v905 = vand.u32 %v904, 4294901760
    %906 = vmatmul.mubr.f32.gmra.mxu0 %v905
    %v907 = vpop.f32.mrf.mxu0
    %v908 = vadd.f32 %v827, %v907
    %v909 = vpop.f32.mrf.mxu0
    %910 = vdwg.mxu0
    %911 = vmatprep.subr.mxu0 0.0
    %912 = vmatpush1.msra.mxu0 0.0
    %913 = vmatprep.subr.mxu0 0.0
    %914 = vmatpush1.msra.mxu0 0.0
    %915 = vmatprep.subr.mxu0 0.0
    %916 = vmatpush1.msra.mxu0 0.0
    %917 = vmatprep.subr.mxu0 0.0
    %918 = vmatpush1.msra.mxu0 0.0
    %919 = vmatprep.subr.mxu0 0.0
    %920 = vmatpush1.msra.mxu0 0.0
    %921 = vmatprep.subr.mxu0 0.0
    %922 = vmatpush1.msra.mxu0 0.0
    %923 = vmatprep.subr.mxu0 0.0
    %924 = vmatpush1.msra.mxu0 0.0
    %925 = vmatprep.subr.mxu0 0.0
    %926 = vmatpush1.msra.mxu0 0.0
    %927 = vmatprep.subr.mxu0 0.0
    %v928 = vand.u32 %v543, 4294901760
    %v929 = vsub.f32 %v543, %v928
    %v930 = vand.u32 %v929, 4294901760
    %931 = vmatpush1.msra.mxu0 %v930
    %932 = vmatprep.subr.mxu0 0.0
    %v933 = vand.u32 %v542, 4294901760
    %v934 = vsub.f32 %v542, %v933
    %v935 = vand.u32 %v934, 4294901760
    %936 = vmatpush1.msra.mxu0 %v935
    %937 = vmatprep.subr.mxu0 0.0
    %v938 = vand.u32 %v541, 4294901760
    %v939 = vsub.f32 %v541, %v938
    %v940 = vand.u32 %v939, 4294901760
    %941 = vmatpush1.msra.mxu0 %v940
    %942 = vmatprep.subr.mxu0 0.0
    %v943 = vand.u32 %v540, 4294901760
    %v944 = vsub.f32 %v540, %v943
    %v945 = vand.u32 %v944, 4294901760
    %946 = vmatpush1.msra.mxu0 %v945
    %947 = vmatprep.subr.mxu0 0.0
    %v948 = vand.u32 %v539, 4294901760
    %v949 = vsub.f32 %v539, %v948
    %v950 = vand.u32 %v949, 4294901760
    %951 = vmatpush1.msra.mxu0 %v950
    %952 = vmatprep.subr.mxu0 0.0
    %v953 = vand.u32 %v538, 4294901760
    %v954 = vsub.f32 %v538, %v953
    %v955 = vand.u32 %v954, 4294901760
    %956 = vmatpush1.msra.mxu0 %v955
    %957 = vmatprep.subr.mxu0 0.0
    %v958 = vand.u32 %v537, 4294901760
    %v959 = vsub.f32 %v537, %v958
    %v960 = vand.u32 %v959, 4294901760
    %961 = vmatpush1.msra.mxu0 %v960
    %962 = vmatprep.subr.mxu0 0.0
    %v963 = vand.u32 %v536, 4294901760
    %v964 = vsub.f32 %v536, %v963
    %v965 = vand.u32 %v964, 4294901760
    %966 = vmatpush1.msra.mxu0 %v965
    %967 = vmatprep.subr.mxu0 0.0
    %968 = vmatpush2.msra.mxu0 0.0
    %969 = vmatprep.subr.mxu0 0.0
    %970 = vmatpush2.msra.mxu0 0.0
    %971 = vmatprep.subr.mxu0 0.0
    %972 = vmatpush2.msra.mxu0 0.0
    %973 = vmatprep.subr.mxu0 0.0
    %974 = vmatpush2.msra.mxu0 0.0
    %975 = vmatprep.subr.mxu0 0.0
    %976 = vmatpush2.msra.mxu0 0.0
    %977 = vmatprep.subr.mxu0 0.0
    %978 = vmatpush2.msra.mxu0 0.0
    %979 = vmatprep.subr.mxu0 0.0
    %980 = vmatpush2.msra.mxu0 0.0
    %981 = vmatprep.subr.mxu0 0.0
    %982 = vmatpush2.msra.mxu0 0.0
    %983 = vmatprep.subr.mxu0 0.0
    %984 = vmatpush2.msra.mxu0 0.0
    %985 = vmatprep.subr.mxu0 0.0
    %986 = vmatpush2.msra.mxu0 0.0
    %987 = vmatprep.subr.mxu0 0.0
    %988 = vmatpush2.msra.mxu0 0.0
    %989 = vmatprep.subr.mxu0 0.0
    %990 = vmatpush2.msra.mxu0 0.0
    %991 = vmatprep.subr.mxu0 0.0
    %992 = vmatpush2.msra.mxu0 0.0
    %993 = vmatprep.subr.mxu0 0.0
    %994 = vmatpush2.msra.mxu0 0.0
    %995 = vmatprep.subr.mxu0 0.0
    %996 = vmatpush2.msra.mxu0 0.0
    %997 = vmatprep.subr.mxu0 0.0
    %998 = vmatpush2.msra.mxu0 0.0
    %999 = vmatprep.mubr.f32.mxu0 0.0
    %v1000 = vand.u32 %v546, 4294901760
    %1001 = vmatmul.mubr.f32.gmra.mxu0 %v1000
    %v1002 = vpop.f32.mrf.mxu0
    %v1003 = vadd.f32 %v908, %v1002
    %v1004 = vpop.f32.mrf.mxu0
    %1005 = vdwg.mxu0
    %1006 = vmatprep.subr.mxu0 0.0
    %1007 = vmatpush1.msra.mxu0 0.0
    %1008 = vmatprep.subr.mxu0 0.0
    %1009 = vmatpush1.msra.mxu0 0.0
    %1010 = vmatprep.subr.mxu0 0.0
    %1011 = vmatpush1.msra.mxu0 0.0
    %1012 = vmatprep.subr.mxu0 0.0
    %1013 = vmatpush1.msra.mxu0 0.0
    %1014 = vmatprep.subr.mxu0 0.0
    %1015 = vmatpush1.msra.mxu0 0.0
    %1016 = vmatprep.subr.mxu0 0.0
    %1017 = vmatpush1.msra.mxu0 0.0
    %1018 = vmatprep.subr.mxu0 0.0
    %1019 = vmatpush1.msra.mxu0 0.0
    %1020 = vmatprep.subr.mxu0 0.0
    %1021 = vmatpush1.msra.mxu0 0.0
    %1022 = vmatprep.subr.mxu0 0.0
    %v1023 = vand.u32 %v543, 4294901760
    %1024 = vmatpush1.msra.mxu0 %v1023
    %1025 = vmatprep.subr.mxu0 0.0
    %v1026 = vand.u32 %v542, 4294901760
    %1027 = vmatpush1.msra.mxu0 %v1026
    %1028 = vmatprep.subr.mxu0 0.0
    %v1029 = vand.u32 %v541, 4294901760
    %1030 = vmatpush1.msra.mxu0 %v1029
    %1031 = vmatprep.subr.mxu0 0.0
    %v1032 = vand.u32 %v540, 4294901760
    %1033 = vmatpush1.msra.mxu0 %v1032
    %1034 = vmatprep.subr.mxu0 0.0
    %v1035 = vand.u32 %v539, 4294901760
    %1036 = vmatpush1.msra.mxu0 %v1035
    %1037 = vmatprep.subr.mxu0 0.0
    %v1038 = vand.u32 %v538, 4294901760
    %1039 = vmatpush1.msra.mxu0 %v1038
    %1040 = vmatprep.subr.mxu0 0.0
    %v1041 = vand.u32 %v537, 4294901760
    %1042 = vmatpush1.msra.mxu0 %v1041
    %1043 = vmatprep.subr.mxu0 0.0
    %v1044 = vand.u32 %v536, 4294901760
    %1045 = vmatpush1.msra.mxu0 %v1044
    %1046 = vmatprep.subr.mxu0 0.0
    %1047 = vmatpush2.msra.mxu0 0.0
    %1048 = vmatprep.subr.mxu0 0.0
    %1049 = vmatpush2.msra.mxu0 0.0
    %1050 = vmatprep.subr.mxu0 0.0
    %1051 = vmatpush2.msra.mxu0 0.0
    %1052 = vmatprep.subr.mxu0 0.0
    %1053 = vmatpush2.msra.mxu0 0.0
    %1054 = vmatprep.subr.mxu0 0.0
    %1055 = vmatpush2.msra.mxu0 0.0
    %1056 = vmatprep.subr.mxu0 0.0
    %1057 = vmatpush2.msra.mxu0 0.0
    %1058 = vmatprep.subr.mxu0 0.0
    %1059 = vmatpush2.msra.mxu0 0.0
    %1060 = vmatprep.subr.mxu0 0.0
    %1061 = vmatpush2.msra.mxu0 0.0
    %1062 = vmatprep.subr.mxu0 0.0
    %1063 = vmatpush2.msra.mxu0 0.0
    %1064 = vmatprep.subr.mxu0 0.0
    %1065 = vmatpush2.msra.mxu0 0.0
    %1066 = vmatprep.subr.mxu0 0.0
    %1067 = vmatpush2.msra.mxu0 0.0
    %1068 = vmatprep.subr.mxu0 0.0
    %1069 = vmatpush2.msra.mxu0 0.0
    %1070 = vmatprep.subr.mxu0 0.0
    %1071 = vmatpush2.msra.mxu0 0.0
    %1072 = vmatprep.subr.mxu0 0.0
    %1073 = vmatpush2.msra.mxu0 0.0
    %1074 = vmatprep.subr.mxu0 0.0
    %1075 = vmatpush2.msra.mxu0 0.0
    %1076 = vmatprep.subr.mxu0 0.0
    %1077 = vmatpush2.msra.mxu0 0.0
    %1078 = vmatprep.mubr.f32.mxu0 0.0
    %v1079 = vand.u32 %v546, 4294901760
    %1080 = vmatmul.mubr.f32.gmra.mxu0 %v1079
    %v1081 = vpop.f32.mrf.mxu0
    %v1082 = vadd.f32 %v1003, %v1081
    %v1083 = vpop.f32.mrf.mxu0
    %1084 = vdwg.mxu0
    %v1085 = vld [vmem:[%s4] sm:$0x1]
    %v1087 = vlaneseq
    %v1088 = vshrl.u32 %v1087, 7
    %v1089 = vsub.s32 0, %v1088
    %v1090 = vrot.slane %v1085, %v1089
    %v1092 = vadd.f32 %v1082, %v1090
    %vm1093 = vcmask 31744
    %1094 = vst.msk [vmem:[#allocation8] sm:$0xff] %vm1093, %v1092
    // Predicated region
    $region34: #{tpu_custom_call.1} parent=1 // pred_check
      _
    $region35: #{tpu_custom_call.1} parent=1 // pred_check_branch
      %1096 = sbr.rel (0) target = $region37
    $region36: #{tpu_custom_call.1} parent=1 // pred_region
      %s1098 = ssub.s32 128, 32
      %1099 = vsyncadd [#allocation4], %s1098
      %s1100 = sshll.u32 [#allocation8], 4
      %s1101 = int_to_ptr.vmem [resolvable:$true] %s1100
      %1106 = dma.vmem_to_hbm [thread:$0]  %s1101, 32, %s5, [#allocation4], 32, 32, 2
    $region37: #{tpu_custom_call.1} parent=1 // pred_fallthru
      _
    // Predicated region
    $region38: #{tpu_custom_call.1} parent=1 // pred_check
      _
    $region39: #{tpu_custom_call.1} parent=1 // pred_check_branch
      %1108 = sbr.rel (0) target = $region41
    $region40: #{tpu_custom_call.1} parent=1 // pred_region
      %1109 = dma.done [#allocation4], 128
    $region41: #{tpu_custom_call.1} parent=1 // pred_fallthru
      _
    %1110 = vsyncpa [#allocation3], 1
    %1111 = vsyncpa [#allocation6], 1
    %1112 = vsyncpa [#allocation4], 1

</llo_original>
